<compile_context>
chip_gen: v5e
topology: v5e:2x2
jax: 0.10.0
libtpu: 0.0.40
codegen_flags: <defaults>
</compile_context>

<pallas_src>
import functools

import jax
import jax.numpy as jnp
from jax.experimental import pallas as pl
from jax.experimental.pallas import tpu as pltpu


def ada_layernorm_kernel(ops_ref, shift_ref, x_ref, o_ref):
    """One grid step normalizes a (TM, D) tile of rows.

    ops_ref   : (1, D)   precomputed (1 + scale), f32
    shift_ref : (1, D)   precomputed shift, f32
    x_ref     : (TM, D)  input row tile
    o_ref     : (TM, D)  output row tile
    """
    x = x_ref[...].astype(jnp.float32)                      # (TM, D)

    # LayerNorm (no affine, eps=1e-5, biased variance) over the last axis.
    mean = jnp.mean(x, axis=-1, keepdims=True)
    xc = x - mean
    var = jnp.mean(xc * xc, axis=-1, keepdims=True)
    xn = xc * jax.lax.rsqrt(var + 1e-5)

    # Modulation: single multiply-add with pre-folded (1 + scale) and shift.
    o_ref[...] = (xn * ops_ref[...] + shift_ref[...]).astype(o_ref.dtype)


@functools.partial(jax.jit, static_argnames=("block_rows",))
def ada_layernorm(x, timestep, emb_table, lin_w, lin_b, *, block_rows=512):
    """x: (B, S, D); timestep: scalar int32; emb_table: (num_embeddings, D);
    lin_w: (2D, D) (PyTorch layout); lin_b: (2D,)."""
    B, S, D = x.shape

    # --- Hoisted timestep projection (tiny, identical for every row of x) ---
    e = emb_table[timestep].astype(jnp.float32)
    e = e * jax.nn.sigmoid(e)                                # SiLU
    proj = lin_w.astype(jnp.float32) @ e + lin_b.astype(jnp.float32)   # (2D,)
    one_plus_scale = (1.0 + proj[:D])[None, :]               # (1, D) f32
    shift = proj[D:][None, :]                                # (1, D) f32

    # --- Flatten to rows and pick a row-tile size (multiple of 8) ---
    rows = B * S
    tm = min(block_rows, rows)
    tm = max(8, (tm // 8) * 8)
    rows_padded = pl.cdiv(rows, tm) * tm

    x2 = x.reshape(rows, D)
    if rows_padded != rows:
        # Zero-padded rows normalize to finite values and are sliced off below.
        x2 = jnp.pad(x2, ((0, rows_padded - rows), (0, 0)))

    grid = (rows_padded // tm,)
    itemsize = jnp.dtype(x.dtype).itemsize

    out = pl.pallas_call(
        ada_layernorm_kernel,
        out_shape=jax.ShapeDtypeStruct((rows_padded, D), x.dtype),
        grid_spec=pltpu.PrefetchScalarGridSpec(
            num_scalar_prefetch=0,
            grid=grid,
            in_specs=[
                pl.BlockSpec((1, D), lambda i: (0, 0)),      # 1 + scale (replicated)
                pl.BlockSpec((1, D), lambda i: (0, 0)),      # shift     (replicated)
                pl.BlockSpec((tm, D), lambda i: (i, 0)),     # x row tile
            ],
            out_specs=pl.BlockSpec((tm, D), lambda i: (i, 0)),
        ),
        compiler_params=pltpu.CompilerParams(
            dimension_semantics=("parallel",),
            # Row tiles are kept small (<= 512 x D x 4B per buffer), so the
            # double-buffered in+out footprint stays far below this limit on
            # every generation (incl. v7x's 64 MiB physical VMEM).
            vmem_limit_bytes=64 * 1024 * 1024,
        ),
        cost_estimate=pl.CostEstimate(
            flops=5 * rows * D,
            transcendentals=rows,                            # one rsqrt per row
            bytes_accessed=2 * rows * D * itemsize,
        ),
    )(one_plus_scale, shift, x2)

    if rows_padded != rows:
        out = out[:rows]
    return out.reshape(B, S, D)


def ada_layernorm_ref(x, timestep, emb_table, lin_w, lin_b):
    """Pure-JAX reference matching the PyTorch module."""
    e = emb_table[timestep]
    e = e * jax.nn.sigmoid(e)
    proj = lin_w @ e + lin_b                                 # (2D,)
    D = x.shape[-1]
    scale, shift = proj[:D], proj[D:]
    mean = jnp.mean(x, axis=-1, keepdims=True)
    var = jnp.mean((x - mean) ** 2, axis=-1, keepdims=True)
    xn = (x - mean) / jnp.sqrt(var + 1e-5)
    return xn * (1 + scale) + shift


if __name__ == "__main__":
    embedding_dim = 32
    num_embeddings = 16
    B, S = 2, 8

    key = jax.random.PRNGKey(0)
    k_emb, k_w, k_b, k_x = jax.random.split(key, 4)

    # Deterministic synthetic parameters (shapes from the module's __init__).
    emb_table = jax.random.normal(k_emb, (num_embeddings, embedding_dim), jnp.float32)
    lin_w = jax.random.normal(k_w, (2 * embedding_dim, embedding_dim), jnp.float32) * 0.05
    lin_b = jax.random.normal(k_b, (2 * embedding_dim,), jnp.float32) * 0.05

    x = jax.random.normal(k_x, (B, S, embedding_dim), jnp.float32)
    timestep = jnp.int32(3)

    out = ada_layernorm(x, timestep, emb_table, lin_w, lin_b)
    out = jax.block_until_ready(out)

    ref = ada_layernorm_ref(x, timestep, emb_table, lin_w, lin_b)
    assert out.shape == ref.shape
    assert jnp.allclose(out, ref, atol=1e-4, rtol=1e-4), "mismatch vs reference"

    print("KERNEL_OK")
</pallas_src>

<mosaic_0001>
module attributes {stable_mosaic.version = 11 : i64} {
  func.func @ada_layernorm_kernel(%arg0: i32, %arg1: memref<1x32xf32, #tpu.memory_space<vmem>>, %arg2: memref<1x32xf32, #tpu.memory_space<vmem>>, %arg3: memref<16x32xf32, #tpu.memory_space<vmem>>, %arg4: memref<16x32xf32, #tpu.memory_space<vmem>>) attributes {dimension_semantics = [#tpu.dimension_semantics<parallel>], iteration_bounds = array<i64: 1>, scalar_prefetch = 0 : i64, scratch_operands = 0 : i64, tpu.core_type = #tpu.core_type<tc>, window_params = [{pipeline_mode = #tpu.pipeline_mode<synchronous>, transform_indices = @transform_0, window_bounds = array<i64: 1, 32>}, {pipeline_mode = #tpu.pipeline_mode<synchronous>, transform_indices = @transform_1, window_bounds = array<i64: 1, 32>}, {transform_indices = @transform_2, window_bounds = array<i64: 16, 32>}, {transform_indices = @transform_3, window_bounds = array<i64: 16, 32>}]} {
    %c0 = arith.constant 0 : index
    %c0_0 = arith.constant 0 : index
    %0 = vector.load %arg3[%c0, %c0_0] : memref<16x32xf32, #tpu.memory_space<vmem>>, vector<16x32xf32>
    %cst = arith.constant dense<0.000000e+00> : vector<16xf32>
    %1 = vector.multi_reduction <add>, %0, %cst [1] : vector<16x32xf32> to vector<16xf32>
    %2 = vector.shape_cast %1 : vector<16xf32> to vector<16x1xf32>
    %cst_1 = arith.constant 3.200000e+01 : f32
    %3 = vector.broadcast %cst_1 : f32 to vector<16x1xf32>
    %4 = arith.divf %2, %3 : vector<16x1xf32>
    %5 = vector.broadcast %4 : vector<16x1xf32> to vector<16x32xf32>
    %6 = arith.subf %0, %5 : vector<16x32xf32>
    %7 = arith.mulf %6, %6 : vector<16x32xf32>
    %cst_2 = arith.constant dense<0.000000e+00> : vector<16xf32>
    %8 = vector.multi_reduction <add>, %7, %cst_2 [1] : vector<16x32xf32> to vector<16xf32>
    %9 = vector.shape_cast %8 : vector<16xf32> to vector<16x1xf32>
    %cst_3 = arith.constant 3.200000e+01 : f32
    %10 = vector.broadcast %cst_3 : f32 to vector<16x1xf32>
    %11 = arith.divf %9, %10 : vector<16x1xf32>
    %cst_4 = arith.constant 9.99999974E-6 : f32
    %12 = vector.broadcast %cst_4 : f32 to vector<16x1xf32>
    %13 = arith.addf %11, %12 : vector<16x1xf32>
    %14 = math.rsqrt %13 : vector<16x1xf32>
    %15 = vector.broadcast %14 : vector<16x1xf32> to vector<16x32xf32>
    %16 = arith.mulf %6, %15 : vector<16x32xf32>
    %c0_5 = arith.constant 0 : index
    %c0_6 = arith.constant 0 : index
    %17 = vector.load %arg1[%c0_5, %c0_6] : memref<1x32xf32, #tpu.memory_space<vmem>>, vector<1x32xf32>
    %18 = vector.broadcast %17 : vector<1x32xf32> to vector<16x32xf32>
    %19 = arith.mulf %16, %18 : vector<16x32xf32>
    %c0_7 = arith.constant 0 : index
    %c0_8 = arith.constant 0 : index
    %20 = vector.load %arg2[%c0_7, %c0_8] : memref<1x32xf32, #tpu.memory_space<vmem>>, vector<1x32xf32>
    %21 = vector.broadcast %20 : vector<1x32xf32> to vector<16x32xf32>
    %22 = arith.addf %19, %21 : vector<16x32xf32>
    %c0_9 = arith.constant 0 : index
    %c0_10 = arith.constant 0 : index
    %23 = vector.load %arg4[%c0_9, %c0_10] : memref<16x32xf32, #tpu.memory_space<vmem>>, vector<16x32xf32>
    tpu.vector_store %arg4[%c0_9, %c0_10], %22 {strides = array<i32>} : memref<16x32xf32, #tpu.memory_space<vmem>>, vector<16x32xf32>,
    return
  }
  func.func @transform_0(%arg0: i32) -> (i32, i32) {
    %c0_i32 = arith.constant 0 : i32
    %c0_i32_0 = arith.constant 0 : i32
    %c0_i32_1 = arith.constant 0 : i32
    return %c0_i32, %c0_i32_0 : i32, i32
  }
  func.func @transform_1(%arg0: i32) -> (i32, i32) {
    %c0_i32 = arith.constant 0 : i32
    %c0_i32_0 = arith.constant 0 : i32
    %c0_i32_1 = arith.constant 0 : i32
    return %c0_i32, %c0_i32_0 : i32, i32
  }
  func.func @transform_2(%arg0: i32) -> (i32, i32) {
    %c0_i32 = arith.constant 0 : i32
    %c0_i32_0 = arith.constant 0 : i32
    return %arg0, %c0_i32 : i32, i32
  }
  func.func @transform_3(%arg0: i32) -> (i32, i32) {
    %c0_i32 = arith.constant 0 : i32
    %c0_i32_0 = arith.constant 0 : i32
    return %arg0, %c0_i32 : i32, i32
  }
}

</mosaic_0001>

<llo_original>
// kernel: ada_layernorm.1
$region0: #{ada_layernorm.1}
  #allocation0 [shape = 'u32[]', space=smem, size = 0x4, offset = 0x4, fixed_abs, tag = 'smem constant byte address 0x4 - core index']
  #allocation1 [shape = 'u32[72,128]{1,0:T(1,128)}', space=vmem, size = 0x9000, scoped, tag = 'internal scratch']
  %s0 = inlined_call_operand.vmem [shape: f32[1,32], index: 0, kind: input, shape index: {}]
  %s1 = inlined_call_operand.vmem [shape: f32[1,32], index: 1, kind: input, shape index: {}]
  %s2 = inlined_call_operand.vmem [shape: f32[16,32], index: 2, kind: input, shape index: {}]
  %s3 = inlined_call_operand.hbm [shape: f32[16,32], index: 3, kind: output, shape index: {}]
  %s4 = sld [smem:[#allocation0]]
  $region22: #{ada_layernorm.1} parent=0
    _
  %s6 = ssub.s32 1, %s4
  %s7 = scalar_select 0, %s6, %s4
  $region1: #{ada_layernorm.1} parent=0
    #allocation2 [shape = 'u8[8192]{0}', space=vmem, size = 0x2000, scoped, tag = 'output window, operand 0, single buffered']
    #allocation3 [shape = 's32[1]{0}', space=sflag, size = 0x4, scoped, tag = 'scoped memory for ada_layernorm.1']
    %8 = vsyncpa [#allocation3], 0
    // Predicated region
    $region2: #{ada_layernorm.1} parent=1 // pred_check
      _
    $region3: #{ada_layernorm.1} parent=1 // pred_check_branch
      %10 = sbr.rel (0) target = $region5
    $region4: #{ada_layernorm.1} parent=1 // pred_region
      _
    $region5: #{ada_layernorm.1} parent=1 // pred_fallthru
      _
    // Predicated region
    $region6: #{ada_layernorm.1} parent=1 // pred_check
      _
    $region7: #{ada_layernorm.1} parent=1 // pred_check_branch
      %12 = sbr.rel (0) target = $region9
    $region8: #{ada_layernorm.1} parent=1 // pred_region
      _
    $region9: #{ada_layernorm.1} parent=1 // pred_fallthru
      _
    // Predicated region
    $region10: #{ada_layernorm.1} parent=1 // pred_check
      _
    $region11: #{ada_layernorm.1} parent=1 // pred_check_branch
      %14 = sbr.rel (0) target = $region13
    $region12: #{ada_layernorm.1} parent=1 // pred_region
      _
    $region13: #{ada_layernorm.1} parent=1 // pred_fallthru
      _
    %v15 = vld [vmem:[%s2] sm:$0xff]
    %v16 = vld [vmem:[%s2 + $0x8] sm:$0xff]
    %vm17 = vcmask 261120
    %v18 = vsel %vm17, %v15, 0.0
    %19 = vadd.xlane.f32.xlu0 %v18
    %v20 = vpop.xlane.xlu0 %19
    %v21 = vsel %vm17, %v16, 0.0
    %22 = vadd.xlane.f32.xlu0 %v21
    %v23 = vpop.xlane.xlu0 %22
    %v24 = vrcp.pop 32.0
    %v25 = vmul.f32 32.0, %v24
    %v26 = vsub.f32 1.0, %v25
    %v27 = vmul.f32 %v24, %v26
    %v28 = vadd.f32 %v24, %v27
    %vm29 = vweird.f32 %v24
    %v30 = vsel %vm29, %v24, %v28
    %v31 = vmul.f32 %v20, %v30
    %v32 = vmul.f32 %v23, %v30
    %v33 = vsub.f32 %v15, %v31
    %v34 = vsub.f32 %v16, %v32
    %v35 = vmul.f32 %v33, %v33
    %v36 = vmul.f32 %v34, %v34
    %v37 = vsel %vm17, %v35, 0.0
    %38 = vadd.xlane.f32.xlu0 %v37
    %v39 = vpop.xlane.xlu0 %38
    %v40 = vsel %vm17, %v36, 0.0
    %41 = vadd.xlane.f32.xlu0 %v40
    %v42 = vpop.xlane.xlu0 %41
    %v43 = vmul.f32 %v39, %v30
    %v44 = vmul.f32 %v42, %v30
    %v45 = vadd.f32 %v43, 1e-05
    %v46 = vadd.f32 %v44, 1e-05
    %v47 = vrsqrt.pop %v45
    %v48 = vmul.f32 %v47, %v45
    %v49 = vmul.f32 %v48, %v47
    %v50 = vmul.f32 0.5, %v49
    %v51 = vsub.f32 1.5, %v50
    %v52 = vmul.f32 %v47, %v51
    %vm53 = vweird.f32 %v45
    %vm54 = vweird.f32 %v47
    %vm55 = vmor %vm53, %vm54
    %v56 = vsel %vm55, %v47, %v52
    %v57 = vrsqrt.pop %v46
    %v58 = vmul.f32 %v57, %v46
    %v59 = vmul.f32 %v58, %v57
    %v60 = vmul.f32 0.5, %v59
    %v61 = vsub.f32 1.5, %v60
    %v62 = vmul.f32 %v57, %v61
    %vm63 = vweird.f32 %v46
    %vm64 = vweird.f32 %v57
    %vm65 = vmor %vm63, %vm64
    %v66 = vsel %vm65, %v57, %v62
    %v67 = vmul.f32 %v33, %v56
    %v68 = vmul.f32 %v34, %v66
    %v69 = vld [vmem:[%s0] sm:$0x1]
    %v71 = vperm.slane %v69, 0
    %v73 = vmul.f32 %v67, %v71
    %v74 = vmul.f32 %v68, %v71
    %v75 = vld [vmem:[%s1] sm:$0x1]
    %v77 = vperm.slane %v75, 0
    %v79 = vadd.f32 %v73, %v77
    %v80 = vadd.f32 %v74, %v77
    %81 = vst.msk [vmem:[#allocation2] sm:$0xff] %vm17, %v79
    %82 = vst.msk [vmem:[#allocation2 + $0x8] sm:$0xff] %vm17, %v80
    // Predicated region
    $region14: #{ada_layernorm.1} parent=1 // pred_check
      _
    $region15: #{ada_layernorm.1} parent=1 // pred_check_branch
      %84 = sbr.rel (0) target = $region17
    $region16: #{ada_layernorm.1} parent=1 // pred_region
      %86 = vsyncadd [#allocation3], 0
      %s87 = sshll.u32 [#allocation2], 4
      %s88 = int_to_ptr.vmem [resolvable:$true] %s87
      %s89 = sshll.u32 %s3, 4
      %s90 = int_to_ptr.hbm [resolvable:$true] %s89
      %95 = dma.vmem_to_hbm [thread:$0]  %s88, 256, %s90, [#allocation3], 128, 128, 8
    $region17: #{ada_layernorm.1} parent=1 // pred_fallthru
      _
    // Predicated region
    $region18: #{ada_layernorm.1} parent=1 // pred_check
      _
    $region19: #{ada_layernorm.1} parent=1 // pred_check_branch
      %97 = sbr.rel (0) target = $region21
    $region20: #{ada_layernorm.1} parent=1 // pred_region
      %99 = dma.done [#allocation3], 256
    $region21: #{ada_layernorm.1} parent=1 // pred_fallthru
      _
    %100 = vsyncpa [#allocation3], 1

</llo_original>
